<compile_context>
chip_gen: v7x
topology: tpu7x:2x2x1
jax: 0.10.0
libtpu: 0.0.40
codegen_flags: <defaults>
</compile_context>

<pallas_src>
import functools

import jax
import jax.numpy as jnp
from jax.experimental import pallas as pl
from jax.experimental.pallas import tpu as pltpu


# ---------------------------------------------------------------------------
# Fixed vMF interpolation operators (plain JAX, built once, not learnable).
# ---------------------------------------------------------------------------
def _sphere_grid(nlat, nlon):
    """Unit vectors + area (sin colatitude) weights for an equiangular grid."""
    theta = (jnp.arange(nlat, dtype=jnp.float32) + 0.5) * (jnp.pi / nlat)  # colat
    phi = jnp.arange(nlon, dtype=jnp.float32) * (2.0 * jnp.pi / nlon)      # lon
    th, ph = jnp.meshgrid(theta, phi, indexing="ij")
    xyz = jnp.stack(
        [jnp.sin(th) * jnp.cos(ph), jnp.sin(th) * jnp.sin(ph), jnp.cos(th)], axis=-1
    )
    return xyz.reshape(-1, 3), jnp.sin(th).reshape(-1)


def vmf_operator(kappa, nlat_out, nlon_out, nlat_in, nlon_in):
    """Fixed vMF smoothing operator K: (Nout, Nin), rows sum to 1."""
    p_out, _ = _sphere_grid(nlat_out, nlon_out)
    p_in, w_in = _sphere_grid(nlat_in, nlon_in)
    cos_ang = p_out @ p_in.T                                 # (Nout, Nin)
    k = jnp.exp(kappa * (cos_ang - 1.0)) * w_in[None, :]     # vMF * quadrature
    k = k / jnp.sum(k, axis=1, keepdims=True)                # interpolation
    return k.astype(jnp.float32)


# ---------------------------------------------------------------------------
# Pallas kernel:  out = x @ K_comb + b_comb
#   grid = (M tiles, N tiles, K reduction tiles)  -- reduction axis last.
#   f32 VMEM accumulator, init at k==0, bias + store at k==last.
# ---------------------------------------------------------------------------
def _decoder_kernel(x_ref, k_ref, b_ref, o_ref, acc_ref):
    k = pl.program_id(2)

    @pl.when(k == 0)
    def _():
        acc_ref[...] = jnp.zeros_like(acc_ref)

    acc_ref[...] += jnp.dot(
        x_ref[...], k_ref[...], preferred_element_type=jnp.float32
    )

    @pl.when(k == pl.num_programs(2) - 1)
    def _():
        o_ref[...] = (acc_ref[...] + b_ref[...]).astype(o_ref.dtype)


def _round_up(a, b):
    return -(-a // b) * b


def decoder_forward(x_nchw, k_comb, b_comb, *, nlat, nlon,
                    tm_max=256, tn_max=512, tk_max=512):
    """x_nchw: (B, C, nlat//4, nlon//4) -> (B, C, nlat, nlon).

    k_comb: fused fixed operator, shape (Nin, Nout) with Nin = (nlat//4)*(nlon//4),
            Nout = nlat*nlon.   b_comb: fused bias, shape (1, Nout).
    """
    B, C, hi, wi = x_nchw.shape
    nin = hi * wi
    nout = k_comb.shape[1]
    m = B * C

    # Tile sizes: biggest MXU-friendly tile that does not exceed the dims.
    # (Block shapes must be multiples of (8, 128) or equal the full dim; we pad
    #  the arrays to tile multiples so both constraints are met.)
    tm = min(tm_max, _round_up(m, 8))
    tk = min(tk_max, _round_up(nin, 128))
    tn = min(tn_max, _round_up(nout, 128))
    m_pad = _round_up(m, tm)
    k_pad = _round_up(nin, tk)
    n_pad = _round_up(nout, tn)

    # bf16 operands (MXU-native), f32 accumulation; zero-padding along the
    # contraction dim is exact, M/N padding is sliced away afterwards.
    x2d = x_nchw.reshape(m, nin).astype(jnp.bfloat16)
    x2d = jnp.pad(x2d, ((0, m_pad - m), (0, k_pad - nin)))
    k_p = jnp.pad(k_comb.astype(jnp.bfloat16),
                  ((0, k_pad - nin), (0, n_pad - nout)))
    b_p = jnp.pad(b_comb.astype(jnp.float32).reshape(1, nout),
                  ((0, 0), (0, n_pad - nout)))

    grid = (m_pad // tm, n_pad // tn, k_pad // tk)

    out_pad = pl.pallas_call(
        _decoder_kernel,
        out_shape=jax.ShapeDtypeStruct((m_pad, n_pad), jnp.float32),
        grid_spec=pltpu.PrefetchScalarGridSpec(
            num_scalar_prefetch=0,
            grid=grid,
            in_specs=[
                pl.BlockSpec((tm, tk), lambda i, j, k: (i, k)),   # x tile
                pl.BlockSpec((tk, tn), lambda i, j, k: (k, j)),   # operator tile
                pl.BlockSpec((1, tn), lambda i, j, k: (0, j)),    # bias tile
            ],
            out_specs=pl.BlockSpec((tm, tn), lambda i, j, k: (i, j)),
            scratch_shapes=[pltpu.VMEM((tm, tn), jnp.float32)],
        ),
        compiler_params=pltpu.CompilerParams(
            # M / N tiles are independent (megacore on v7x); reduction is last
            # and must be sequential.
            dimension_semantics=("parallel", "parallel", "arbitrary"),
        ),
    )(x2d, k_p, b_p)

    out = out_pad[:m, :nout]
    return out.reshape(B, C, nlat, nlon)


# ---------------------------------------------------------------------------
# Main
# ---------------------------------------------------------------------------
if __name__ == "__main__":
    # Module hyper-parameters (small but consistent with the forward pass).
    nlat, nlon, kappa = 16, 32, 30.0
    B, C = 2, 4

    # Resolutions implied by input_ratio / output_ratio.
    h_in, w_in = nlat // 4, nlon // 4        # input_ratio = 0.25
    h_mid, w_mid = nlat // 2, nlon // 2      # output_ratio = 0.5 / input of layer 2
    h_out, w_out = nlat, nlon                # default output_ratio = 1.0

    # Fixed vMF operators (weights=False -> no learnable channel mixing).
    K1 = vmf_operator(kappa, h_mid, w_mid, h_in, w_in)      # (Nout1, Nin1)
    K2 = vmf_operator(kappa, h_out, w_out, h_mid, w_mid)    # (Nout2, Nout1)

    # Deterministic learnable biases (bias=True).
    key = jax.random.PRNGKey(0)
    k_x, k_b1, k_b2 = jax.random.split(key, 3)
    b1 = 0.01 * jax.random.normal(k_b1, (1, h_mid * w_mid), dtype=jnp.float32)
    b2 = 0.01 * jax.random.normal(k_b2, (1, h_out * w_out), dtype=jnp.float32)

    # Deterministic input at the quarter-resolution grid.
    x = jax.random.normal(k_x, (B, C, h_in, w_in), dtype=jnp.float32)

    # Offline operator fusion (exact: both vMF operators are non-learnable).
    #   out = x @ (K2 @ K1)^T + (b1 @ K2^T + b2)
    K_comb = (K2 @ K1).T                                     # (Nin1, Nout2)
    b_comb = b1 @ K2.T + b2                                  # (1,    Nout2)
    # TODO(synk): at very high resolution K_comb can additionally exploit the
    # latitude-banded sparsity of the kappa=30 vMF kernel via scalar-prefetched
    # band offsets; not needed at these sizes.

    # Run the Pallas kernel.
    fwd = jax.jit(functools.partial(decoder_forward, nlat=nlat, nlon=nlon))
    out = jax.block_until_ready(fwd(x, K_comb, b_comb))

    # References.
    x2d = x.reshape(B * C, h_in * w_in)
    # (a) bf16-matched reference (same operand precision as the kernel).
    ref_bf16 = (
        jnp.dot(x2d.astype(jnp.bfloat16), K_comb.astype(jnp.bfloat16),
                preferred_element_type=jnp.float32) + b_comb
    ).reshape(B, C, h_out, w_out)
    # (b) exact f32 two-operator reference (module semantics).
    ref_f32 = ((x2d @ K1.T + b1) @ K2.T + b2).reshape(B, C, h_out, w_out)

    assert out.shape == (B, C, nlat, nlon)
    assert jnp.allclose(out, ref_bf16, atol=1e-3, rtol=1e-3)
    assert jnp.allclose(out, ref_f32, atol=5e-2, rtol=5e-2)

    print("KERNEL_OK")
</pallas_src>

<mosaic_0001>
module attributes {stable_mosaic.version = 11 : i64} {
  func.func @_decoder_kernel(%arg0: i32, %arg1: i32, %arg2: i32, %arg3: memref<8x128xbf16, #tpu.memory_space<vmem>>, %arg4: memref<128x512xbf16, #tpu.memory_space<vmem>>, %arg5: memref<1x512xf32, #tpu.memory_space<vmem>>, %arg6: memref<8x512xf32, #tpu.memory_space<vmem>>, %arg7: memref<8x512xf32, #tpu.memory_space<vmem>>) attributes {dimension_semantics = [#tpu.dimension_semantics<parallel>, #tpu.dimension_semantics<parallel>, #tpu.dimension_semantics<arbitrary>], iteration_bounds = array<i64: 1, 1, 1>, scalar_prefetch = 0 : i64, scratch_operands = 1 : i64, tpu.core_type = #tpu.core_type<tc>, window_params = [{transform_indices = @transform_0, window_bounds = array<i64: 8, 128>}, {transform_indices = @transform_1, window_bounds = array<i64: 128, 512>}, {transform_indices = @transform_2, window_bounds = array<i64: 1, 512>}, {transform_indices = @transform_3, window_bounds = array<i64: 8, 512>}]} {
    %c0_i32 = arith.constant 0 : i32
    %0 = arith.cmpi eq, %arg2, %c0_i32 : i32
    %1 = arith.extui %0 : i1 to i32
    %c0_i32_0 = arith.constant 0 : i32
    %2 = arith.cmpi ne, %1, %c0_i32_0 : i32
    scf.if %2 {
      %cst_10 = arith.constant 0.000000e+00 : f32
      %12 = vector.broadcast %cst_10 : f32 to vector<8x512xf32>
      %c0_11 = arith.constant 0 : index
      %c0_12 = arith.constant 0 : index
      %13 = vector.load %arg7[%c0_11, %c0_12] : memref<8x512xf32, #tpu.memory_space<vmem>>, vector<8x512xf32>
      tpu.vector_store %arg7[%c0_11, %c0_12], %12 {strides = array<i32>} : memref<8x512xf32, #tpu.memory_space<vmem>>, vector<8x512xf32>,
    } else {
    }
    %c0 = arith.constant 0 : index
    %c0_1 = arith.constant 0 : index
    %3 = vector.load %arg7[%c0, %c0_1] : memref<8x512xf32, #tpu.memory_space<vmem>>, vector<8x512xf32>
    %c0_2 = arith.constant 0 : index
    %c0_3 = arith.constant 0 : index
    %4 = vector.load %arg3[%c0_2, %c0_3] : memref<8x128xbf16, #tpu.memory_space<vmem>>, vector<8x128xbf16>
    %c0_4 = arith.constant 0 : index
    %c0_5 = arith.constant 0 : index
    %5 = vector.load %arg4[%c0_4, %c0_5] : memref<128x512xbf16, #tpu.memory_space<vmem>>, vector<128x512xbf16>
    %cst = arith.constant dense<0.000000e+00> : vector<8x512xf32>
    %6 = tpu.matmul %4, %5, %cst {dimension_numbers = #tpu.dot_dimension_numbers<[1], [0], [0], [1], [0, 0, 1, 1], [], []>} : vector<8x128xbf16>, vector<128x512xbf16>, vector<8x512xf32> -> vector<8x512xf32>
    %7 = arith.addf %3, %6 : vector<8x512xf32>
    %c0_6 = arith.constant 0 : index
    %c0_7 = arith.constant 0 : index
    %8 = vector.load %arg7[%c0_6, %c0_7] : memref<8x512xf32, #tpu.memory_space<vmem>>, vector<8x512xf32>
    tpu.vector_store %arg7[%c0_6, %c0_7], %7 {strides = array<i32>} : memref<8x512xf32, #tpu.memory_space<vmem>>, vector<8x512xf32>,
    %c0_i32_8 = arith.constant 0 : i32
    %9 = arith.cmpi eq, %arg2, %c0_i32_8 : i32
    %10 = arith.extui %9 : i1 to i32
    %c0_i32_9 = arith.constant 0 : i32
    %11 = arith.cmpi ne, %10, %c0_i32_9 : i32
    scf.if %11 {
      %c0_10 = arith.constant 0 : index
      %c0_11 = arith.constant 0 : index
      %12 = vector.load %arg7[%c0_10, %c0_11] : memref<8x512xf32, #tpu.memory_space<vmem>>, vector<8x512xf32>
      %c0_12 = arith.constant 0 : index
      %c0_13 = arith.constant 0 : index
      %13 = vector.load %arg5[%c0_12, %c0_13] : memref<1x512xf32, #tpu.memory_space<vmem>>, vector<1x512xf32>
      %14 = vector.broadcast %13 : vector<1x512xf32> to vector<8x512xf32>
      %15 = arith.addf %12, %14 : vector<8x512xf32>
      %c0_14 = arith.constant 0 : index
      %c0_15 = arith.constant 0 : index
      %16 = vector.load %arg6[%c0_14, %c0_15] : memref<8x512xf32, #tpu.memory_space<vmem>>, vector<8x512xf32>
      tpu.vector_store %arg6[%c0_14, %c0_15], %15 {strides = array<i32>} : memref<8x512xf32, #tpu.memory_space<vmem>>, vector<8x512xf32>,
    } else {
    }
    return
  }
  func.func @transform_0(%arg0: i32, %arg1: i32, %arg2: i32) -> (i32, i32) {
    %c0_i32 = arith.constant 0 : i32
    return %arg0, %arg2 : i32, i32
  }
  func.func @transform_1(%arg0: i32, %arg1: i32, %arg2: i32) -> (i32, i32) {
    %c0_i32 = arith.constant 0 : i32
    return %arg2, %arg1 : i32, i32
  }
  func.func @transform_2(%arg0: i32, %arg1: i32, %arg2: i32) -> (i32, i32) {
    %c0_i32 = arith.constant 0 : i32
    %c0_i32_0 = arith.constant 0 : i32
    return %c0_i32, %arg1 : i32, i32
  }
  func.func @transform_3(%arg0: i32, %arg1: i32, %arg2: i32) -> (i32, i32) {
    %c0_i32 = arith.constant 0 : i32
    return %arg0, %arg1 : i32, i32
  }
}

</mosaic_0001>

<llo_original>
// kernel: decoder_forward.1
$region0: #{decoder_forward.1}
  #allocation0 [shape = 'u32[]', space=smem, size = 0x4, offset = 0x4, fixed_abs, tag = 'smem constant byte address 0x4 - core index']
  #allocation1 [shape = 'u32[144,128]{1,0:T(1,128)}', space=vmem, size = 0x12000, scoped, tag = 'internal scratch']
  #allocation2 [shape = 'f32[8,512]{1,0:T(8,128)}', space=vmem, size = 0x4000, scoped, tag = 'scratch operand']
  %s0 = inlined_call_operand.vmem [shape: bf16[8,128], index: 0, kind: input, shape index: {}]
  %s1 = inlined_call_operand.vmem [shape: bf16[128,512], index: 1, kind: input, shape index: {}]
  %s2 = inlined_call_operand.vmem [shape: f32[1,512], index: 2, kind: input, shape index: {}]
  %s3 = inlined_call_operand.vmem [shape: f32[8,512], index: 3, kind: output, shape index: {}]
  %s4 = sld [smem:[#allocation0]]
  $region30: #{decoder_forward.1} parent=0
    _
  %s6 = ssub.s32 1, %s4
  %s7 = scalar_select 0, %s6, %s4
  // Predicated region
  $region2: #{decoder_forward.1} parent=0 // pred_check
    _
  $region3: #{decoder_forward.1} parent=0 // pred_check_branch
    %9 = sbr.rel (0) target = $region5
  $region4: #{decoder_forward.1} parent=0 // pred_region
    _
  $region5: #{decoder_forward.1} parent=0 // pred_fallthru
    _
  // Predicated region
  $region6: #{decoder_forward.1} parent=0 // pred_check
    _
  $region7: #{decoder_forward.1} parent=0 // pred_check_branch
    %11 = sbr.rel (0) target = $region9
  $region8: #{decoder_forward.1} parent=0 // pred_region
    _
  $region9: #{decoder_forward.1} parent=0 // pred_fallthru
    _
  // Predicated region
  $region10: #{decoder_forward.1} parent=0 // pred_check
    _
  $region11: #{decoder_forward.1} parent=0 // pred_check_branch
    %13 = sbr.rel (0) target = $region13
  $region12: #{decoder_forward.1} parent=0 // pred_region
    _
  $region13: #{decoder_forward.1} parent=0 // pred_fallthru
    _
  %p15 = scmp.eq.s32.totalorder 0, 0
  // Predicated region
  $region14: #{decoder_forward.1} parent=0 // pred_check
    %p16 = pneg %p15
  $region15: #{decoder_forward.1} parent=0 // pred_check_branch
    %18 = sbr.rel (%p16) target = $region17
  $region16: #{decoder_forward.1} parent=0 // pred_region
    %19 = vst [vmem:[#allocation2] sm:$0xff] 0.0
    %20 = vst [vmem:[#allocation2 + $0x8] sm:$0xff] 0.0
    %21 = vst [vmem:[#allocation2 + $0x10] sm:$0xff] 0.0
    %22 = vst [vmem:[#allocation2 + $0x18] sm:$0xff] 0.0
  $region17: #{decoder_forward.1} parent=0 // pred_fallthru
    _
  %v23 = vld [vmem:[#allocation2] sm:$0xff]
  %v24 = vld [vmem:[#allocation2 + $0x8] sm:$0xff]
  %v25 = vld [vmem:[#allocation2 + $0x10] sm:$0xff]
  %v26 = vld [vmem:[#allocation2 + $0x18] sm:$0xff]
  %v27 = vld [vmem:[%s0] sm:$0xf]
  %v28 = vld [vmem:[%s1] sm:$0xff]
  %v29 = vld [vmem:[%s1 + $0x8] sm:$0xff]
  %v30 = vld [vmem:[%s1 + $0x10] sm:$0xff]
  %v31 = vld [vmem:[%s1 + $0x18] sm:$0xff]
  %v32 = vld [vmem:[%s1 + $0x20] sm:$0xff]
  %v33 = vld [vmem:[%s1 + $0x28] sm:$0xff]
  %v34 = vld [vmem:[%s1 + $0x30] sm:$0xff]
  %v35 = vld [vmem:[%s1 + $0x38] sm:$0xff]
  %v36 = vld [vmem:[%s1 + $0x40] sm:$0xff]
  %v37 = vld [vmem:[%s1 + $0x48] sm:$0xff]
  %v38 = vld [vmem:[%s1 + $0x50] sm:$0xff]
  %v39 = vld [vmem:[%s1 + $0x58] sm:$0xff]
  %v40 = vld [vmem:[%s1 + $0x60] sm:$0xff]
  %v41 = vld [vmem:[%s1 + $0x68] sm:$0xff]
  %v42 = vld [vmem:[%s1 + $0x70] sm:$0xff]
  %v43 = vld [vmem:[%s1 + $0x78] sm:$0xff]
  %v44 = vld [vmem:[%s1 + $0x80] sm:$0xff]
  %v45 = vld [vmem:[%s1 + $0x88] sm:$0xff]
  %v46 = vld [vmem:[%s1 + $0x90] sm:$0xff]
  %v47 = vld [vmem:[%s1 + $0x98] sm:$0xff]
  %v48 = vld [vmem:[%s1 + $0xa0] sm:$0xff]
  %v49 = vld [vmem:[%s1 + $0xa8] sm:$0xff]
  %v50 = vld [vmem:[%s1 + $0xb0] sm:$0xff]
  %v51 = vld [vmem:[%s1 + $0xb8] sm:$0xff]
  %v52 = vld [vmem:[%s1 + $0xc0] sm:$0xff]
  %v53 = vld [vmem:[%s1 + $0xc8] sm:$0xff]
  %v54 = vld [vmem:[%s1 + $0xd0] sm:$0xff]
  %v55 = vld [vmem:[%s1 + $0xd8] sm:$0xff]
  %v56 = vld [vmem:[%s1 + $0xe0] sm:$0xff]
  %v57 = vld [vmem:[%s1 + $0xe8] sm:$0xff]
  %v58 = vld [vmem:[%s1 + $0xf0] sm:$0xff]
  %v59 = vld [vmem:[%s1 + $0xf8] sm:$0xff]
  %v92 = vunpack.c.l.b16 %v28
  %v93 = vunpack.c.h.b16 %v28
  %v94 = vunpack.c.l.b16 %v29
  %v95 = vunpack.c.h.b16 %v29
  %v96 = vunpack.c.l.b16 %v30
  %v97 = vunpack.c.h.b16 %v30
  %v98 = vunpack.c.l.b16 %v31
  %v99 = vunpack.c.h.b16 %v31
  %v100 = vunpack.c.l.b16 %v32
  %v101 = vunpack.c.h.b16 %v32
  %v102 = vunpack.c.l.b16 %v33
  %v103 = vunpack.c.h.b16 %v33
  %v104 = vunpack.c.l.b16 %v34
  %v105 = vunpack.c.h.b16 %v34
  %v106 = vunpack.c.l.b16 %v35
  %v107 = vunpack.c.h.b16 %v35
  %v108 = vunpack.c.l.b16 %v36
  %v109 = vunpack.c.h.b16 %v36
  %v110 = vunpack.c.l.b16 %v37
  %v111 = vunpack.c.h.b16 %v37
  %v112 = vunpack.c.l.b16 %v38
  %v113 = vunpack.c.h.b16 %v38
  %v114 = vunpack.c.l.b16 %v39
  %v115 = vunpack.c.h.b16 %v39
  %v116 = vunpack.c.l.b16 %v40
  %v117 = vunpack.c.h.b16 %v40
  %v118 = vunpack.c.l.b16 %v41
  %v119 = vunpack.c.h.b16 %v41
  %v120 = vunpack.c.l.b16 %v42
  %v121 = vunpack.c.h.b16 %v42
  %v122 = vunpack.c.l.b16 %v43
  %v123 = vunpack.c.h.b16 %v43
  %v124 = vunpack.c.l.b16 %v44
  %v125 = vunpack.c.h.b16 %v44
  %v126 = vunpack.c.l.b16 %v45
  %v127 = vunpack.c.h.b16 %v45
  %v128 = vunpack.c.l.b16 %v46
  %v129 = vunpack.c.h.b16 %v46
  %v130 = vunpack.c.l.b16 %v47
  %v131 = vunpack.c.h.b16 %v47
  %v132 = vunpack.c.l.b16 %v48
  %v133 = vunpack.c.h.b16 %v48
  %v134 = vunpack.c.l.b16 %v49
  %v135 = vunpack.c.h.b16 %v49
  %v136 = vunpack.c.l.b16 %v50
  %v137 = vunpack.c.h.b16 %v50
  %v138 = vunpack.c.l.b16 %v51
  %v139 = vunpack.c.h.b16 %v51
  %v140 = vunpack.c.l.b16 %v52
  %v141 = vunpack.c.h.b16 %v52
  %v142 = vunpack.c.l.b16 %v53
  %v143 = vunpack.c.h.b16 %v53
  %v144 = vunpack.c.l.b16 %v54
  %v145 = vunpack.c.h.b16 %v54
  %v146 = vunpack.c.l.b16 %v55
  %v147 = vunpack.c.h.b16 %v55
  %v148 = vunpack.c.l.b16 %v56
  %v149 = vunpack.c.h.b16 %v56
  %v150 = vunpack.c.l.b16 %v57
  %v151 = vunpack.c.h.b16 %v57
  %v152 = vunpack.c.l.b16 %v58
  %v153 = vunpack.c.h.b16 %v58
  %v154 = vunpack.c.l.b16 %v59
  %v155 = vunpack.c.h.b16 %v59
  %v156 = vpack.c.b16 %v96, %v92
  %v157 = vpack.c.b16 %v97, %v93
  %v158 = vpack.c.b16 %v98, %v94
  %v159 = vpack.c.b16 %v99, %v95
  %v160 = vpack.c.b16 %v104, %v100
  %v161 = vpack.c.b16 %v105, %v101
  %v162 = vpack.c.b16 %v106, %v102
  %v163 = vpack.c.b16 %v107, %v103
  %v164 = vpack.c.b16 %v112, %v108
  %v165 = vpack.c.b16 %v113, %v109
  %v166 = vpack.c.b16 %v114, %v110
  %v167 = vpack.c.b16 %v115, %v111
  %v168 = vpack.c.b16 %v120, %v116
  %v169 = vpack.c.b16 %v121, %v117
  %v170 = vpack.c.b16 %v122, %v118
  %v171 = vpack.c.b16 %v123, %v119
  %v172 = vpack.c.b16 %v128, %v124
  %v173 = vpack.c.b16 %v129, %v125
  %v174 = vpack.c.b16 %v130, %v126
  %v175 = vpack.c.b16 %v131, %v127
  %v176 = vpack.c.b16 %v136, %v132
  %v177 = vpack.c.b16 %v137, %v133
  %v178 = vpack.c.b16 %v138, %v134
  %v179 = vpack.c.b16 %v139, %v135
  %v180 = vpack.c.b16 %v144, %v140
  %v181 = vpack.c.b16 %v145, %v141
  %v182 = vpack.c.b16 %v146, %v142
  %v183 = vpack.c.b16 %v147, %v143
  %v184 = vpack.c.b16 %v152, %v148
  %v185 = vpack.c.b16 %v153, %v149
  %v186 = vpack.c.b16 %v154, %v150
  %v187 = vpack.c.b16 %v155, %v151
  %220 = vmatprep.subr.bf16.mxu0 %v157
  %221 = vmatpush1.bf16.msra.mxu0 %v156
  %222 = vmatprep.subr.bf16.mxu0 %v161
  %223 = vmatpush1.bf16.msra.mxu0 %v160
  %224 = vmatprep.subr.bf16.mxu0 %v165
  %225 = vmatpush1.bf16.msra.mxu0 %v164
  %226 = vmatprep.subr.bf16.mxu0 %v169
  %227 = vmatpush1.bf16.msra.mxu0 %v168
  %228 = vmatprep.subr.bf16.mxu0 %v173
  %229 = vmatpush1.bf16.msra.mxu0 %v172
  %230 = vmatprep.subr.bf16.mxu0 %v177
  %231 = vmatpush1.bf16.msra.mxu0 %v176
  %232 = vmatprep.subr.bf16.mxu0 %v181
  %233 = vmatpush1.bf16.msra.mxu0 %v180
  %234 = vmatprep.subr.bf16.mxu0 %v185
  %235 = vmatpush1.bf16.msra.mxu0 %v184
  %236 = vmatprep.subr.bf16.mxu0 0
  %237 = vmatpush1.bf16.msra.mxu0 0
  %238 = vmatprep.subr.bf16.mxu0 0
  %239 = vmatpush1.bf16.msra.mxu0 0
  %240 = vmatprep.subr.bf16.mxu0 0
  %241 = vmatpush1.bf16.msra.mxu0 0
  %242 = vmatprep.subr.bf16.mxu0 0
  %243 = vmatpush1.bf16.msra.mxu0 0
  %244 = vmatprep.subr.bf16.mxu0 0
  %245 = vmatpush1.bf16.msra.mxu0 0
  %246 = vmatprep.subr.bf16.mxu0 0
  %247 = vmatpush1.bf16.msra.mxu0 0
  %248 = vmatprep.subr.bf16.mxu0 0
  %249 = vmatpush1.bf16.msra.mxu0 0
  %250 = vmatprep.subr.bf16.mxu0 0
  %251 = vmatpush1.bf16.msra.mxu0 0
  %252 = vmatprep.mubr.bf16.mxu0 0
  %253 = vmatmul.mubr.bf16.gmra.mrb[0].mxu0 %v27
  %v254 = vpop.f32.mrb[0].mxu0
  %v255 = vadd.f32 0.0, %v254
  %v256 = vpop.f32.mrb[0].mxu0
  %v257 = vadd.f32 0.0, %v256
  %v258 = vpop.f32.mrb[0].mxu0
  %v259 = vpop.f32.mrb[0].mxu0
  %260 = vdwg.mxu0
  %261 = vmatprep.subr.bf16.mxu0 %v159
  %262 = vmatpush1.bf16.msra.mxu0 %v158
  %263 = vmatprep.subr.bf16.mxu0 %v163
  %264 = vmatpush1.bf16.msra.mxu0 %v162
  %265 = vmatprep.subr.bf16.mxu0 %v167
  %266 = vmatpush1.bf16.msra.mxu0 %v166
  %267 = vmatprep.subr.bf16.mxu0 %v171
  %268 = vmatpush1.bf16.msra.mxu0 %v170
  %269 = vmatprep.subr.bf16.mxu0 %v175
  %270 = vmatpush1.bf16.msra.mxu0 %v174
  %271 = vmatprep.subr.bf16.mxu0 %v179
  %272 = vmatpush1.bf16.msra.mxu0 %v178
  %273 = vmatprep.subr.bf16.mxu0 %v183
  %274 = vmatpush1.bf16.msra.mxu0 %v182
  %275 = vmatprep.subr.bf16.mxu0 %v187
  %276 = vmatpush1.bf16.msra.mxu0 %v186
  %277 = vmatprep.subr.bf16.mxu0 0
  %278 = vmatpush1.bf16.msra.mxu0 0
  %279 = vmatprep.subr.bf16.mxu0 0
  %280 = vmatpush1.bf16.msra.mxu0 0
  %281 = vmatprep.subr.bf16.mxu0 0
  %282 = vmatpush1.bf16.msra.mxu0 0
  %283 = vmatprep.subr.bf16.mxu0 0
  %284 = vmatpush1.bf16.msra.mxu0 0
  %285 = vmatprep.subr.bf16.mxu0 0
  %286 = vmatpush1.bf16.msra.mxu0 0
  %287 = vmatprep.subr.bf16.mxu0 0
  %288 = vmatpush1.bf16.msra.mxu0 0
  %289 = vmatprep.subr.bf16.mxu0 0
  %290 = vmatpush1.bf16.msra.mxu0 0
  %291 = vmatprep.subr.bf16.mxu0 0
  %292 = vmatpush1.bf16.msra.mxu0 0
  %293 = vmatprep.mubr.bf16.mxu0 0
  %294 = vmatmul.mubr.bf16.gmra.mrb[0].mxu0 %v27
  %v295 = vpop.f32.mrb[0].mxu0
  %v296 = vadd.f32 0.0, %v295
  %v297 = vpop.f32.mrb[0].mxu0
  %v298 = vadd.f32 0.0, %v297
  %v299 = vpop.f32.mrb[0].mxu0
  %v300 = vpop.f32.mrb[0].mxu0
  %301 = vdwg.mxu0
  %v302 = vadd.f32 %v23, %v255
  %v303 = vadd.f32 %v24, %v257
  %v304 = vadd.f32 %v25, %v296
  %v305 = vadd.f32 %v26, %v298
  %306 = vst [vmem:[#allocation2] sm:$0xff] %v302
  %307 = vst [vmem:[#allocation2 + $0x8] sm:$0xff] %v303
  %308 = vst [vmem:[#allocation2 + $0x10] sm:$0xff] %v304
  %309 = vst [vmem:[#allocation2 + $0x18] sm:$0xff] %v305
  // Predicated region
  $region18: #{decoder_forward.1} parent=0 // pred_check
    %p310 = pneg %p15
  $region19: #{decoder_forward.1} parent=0 // pred_check_branch
    %312 = sbr.rel (%p310) target = $region21
  $region20: #{decoder_forward.1} parent=0 // pred_region
    %v313 = vld [vmem:[#allocation2] sm:$0xff]
    %v314 = vld [vmem:[#allocation2 + $0x8] sm:$0xff]
    %v315 = vld [vmem:[#allocation2 + $0x10] sm:$0xff]
    %v316 = vld [vmem:[#allocation2 + $0x18] sm:$0xff]
    %v317 = vld [vmem:[%s2] sm:$0xf]
    %v319 = vlaneseq
    %v320 = vshrl.u32 %v319, 7
    %v321 = vsub.s32 0, %v320
    %v322 = vrot.slane %v317, %v321
    %v323 = vlaneseq
    %v324 = vshrl.u32 %v323, 7
    %v325 = vsub.s32 1, %v324
    %v326 = vrot.slane %v317, %v325
    %v327 = vlaneseq
    %v328 = vshrl.u32 %v327, 7
    %v329 = vsub.s32 2, %v328
    %v330 = vrot.slane %v317, %v329
    %v331 = vlaneseq
    %v332 = vshrl.u32 %v331, 7
    %v333 = vsub.s32 3, %v332
    %v334 = vrot.slane %v317, %v333
    %v339 = vadd.f32 %v313, %v322
    %v340 = vadd.f32 %v314, %v326
    %v341 = vadd.f32 %v315, %v330
    %v342 = vadd.f32 %v316, %v334
    %343 = vst [vmem:[%s3] sm:$0xff] %v339
    %344 = vst [vmem:[%s3 + $0x8] sm:$0xff] %v340
    %345 = vst [vmem:[%s3 + $0x10] sm:$0xff] %v341
    %346 = vst [vmem:[%s3 + $0x18] sm:$0xff] %v342
  $region21: #{decoder_forward.1} parent=0 // pred_fallthru
    _
  // Predicated region
  $region22: #{decoder_forward.1} parent=0 // pred_check
    _
  $region23: #{decoder_forward.1} parent=0 // pred_check_branch
    %348 = sbr.rel (0) target = $region25
  $region24: #{decoder_forward.1} parent=0 // pred_region
    _
  $region25: #{decoder_forward.1} parent=0 // pred_fallthru
    _
  // Predicated region
  $region26: #{decoder_forward.1} parent=0 // pred_check
    _
  $region27: #{decoder_forward.1} parent=0 // pred_check_branch
    %350 = sbr.rel (0) target = $region29
  $region28: #{decoder_forward.1} parent=0 // pred_region
    _
  $region29: #{decoder_forward.1} parent=0 // pred_fallthru
    _

</llo_original>
